<compile_context>
chip_gen: v7x
topology: tpu7x:2x2x1
jax: 0.10.0
libtpu: 0.0.40
codegen_flags: <defaults>
</compile_context>

<pallas_src>
import jax
import jax.numpy as jnp
from jax.experimental import pallas as pl
from jax.experimental.pallas import tpu as pltpu

EPS = 1e-5


def _round_up(x, m):
    return (x + m - 1) // m * m


def _vmem_capacity_bytes():
    try:
        return int(pltpu.get_tpu_info().vmem_capacity_bytes)
    except Exception:
        return 64 << 20  # conservative per-core value (v7x)


# ---------------------------------------------------------------------------
# Kernel bodies
# ---------------------------------------------------------------------------
def classblock_kernel_resident(x_ref, scale_ref, shift_ref, w_ref,
                               xn_ref, logits_ref):
    """Single grid axis over batch tiles; full (D, c_pad) weight resident."""
    x = x_ref[...].astype(jnp.float32)
    xn = x * scale_ref[...] + shift_ref[...]          # folded eval-mode BN
    xn_ref[...] = xn.astype(xn_ref.dtype)
    logits_ref[...] = jnp.dot(
        xn.astype(jnp.bfloat16), w_ref[...],
        preferred_element_type=jnp.float32).astype(logits_ref.dtype)


def classblock_kernel_tiled(x_ref, scale_ref, shift_ref, w_ref,
                            xn_ref, logits_ref, xn_bf16):
    """Fallback: (batch tiles, class tiles) grid.

    BN FMA + bf16 cast are done once per batch tile (j == 0) and reused from a
    VMEM scratch for every class tile.  The class axis must stay sequential
    ("arbitrary") for this to be correct.
    """
    @pl.when(pl.program_id(1) == 0)
    def _():
        x = x_ref[...].astype(jnp.float32)
        xn = x * scale_ref[...] + shift_ref[...]
        xn_ref[...] = xn.astype(xn_ref.dtype)
        xn_bf16[...] = xn.astype(jnp.bfloat16)

    logits_ref[...] = jnp.dot(
        xn_bf16[...], w_ref[...],
        preferred_element_type=jnp.float32).astype(logits_ref.dtype)


# ---------------------------------------------------------------------------
# Wrapper
# ---------------------------------------------------------------------------
def classblock_forward(x, gamma, beta, running_mean, running_var, weight,
                       *, tn=1024, tc=512, eps=EPS, xn_dtype=jnp.float32):
    """ClassBlock forward (eval-mode BatchNorm1d -> Linear without bias).

    Args:
      x:       (N, D) input features.
      gamma, beta, running_mean, running_var: (D,) BatchNorm1d parameters.
      weight:  (C, D) classifier weight in PyTorch nn.Linear layout (no bias).
    Returns:
      (x_normed (N, D) xn_dtype, logits (N, C) float32)
    """
    N, D = x.shape
    C = weight.shape[0]

    # --- fold BN into scale / shift (once, outside the kernel) --------------
    scale = (gamma.astype(jnp.float32)
             * jax.lax.rsqrt(running_var.astype(jnp.float32) + eps))
    shift = beta.astype(jnp.float32) - running_mean.astype(jnp.float32) * scale
    scale = scale.reshape(1, D)
    shift = shift.reshape(1, D)

    # --- weight: (D, C) bf16, C padded to a multiple of 128 -----------------
    c_pad = _round_up(C, 128)
    w_t = jnp.transpose(weight).astype(jnp.bfloat16)
    if c_pad != C:
        w_t = jnp.pad(w_t, ((0, 0), (0, c_pad - C)))

    xn_isize = jnp.dtype(xn_dtype).itemsize
    x_isize = x.dtype.itemsize

    # --- generation-aware VMEM budget ----------------------------------------
    vmem_cap = int(0.75 * _vmem_capacity_bytes())

    # --- batch tile ----------------------------------------------------------
    tn = max(8, min(int(tn), _round_up(N, 8)))
    # Prefer >= 2 batch tiles (v7x megacore) when the batch is big enough.
    if pl.cdiv(N, tn) < 2 and N >= 512:
        tn = _round_up(pl.cdiv(N, 2), 8)

    # --- choose resident-weight vs class-tiled path ---------------------------
    w_bytes = D * c_pad * 2
    weight_resident = w_bytes <= max(4 << 20, vmem_cap // 8)

    if weight_resident:
        def budget(bn):
            return (2 * bn * D * x_isize            # x tiles (double-buffered)
                    + 2 * bn * D * xn_isize         # xn output tiles
                    + 2 * bn * c_pad * 4            # logits output tiles
                    + 2 * w_bytes                   # weight (resident)
                    + 4 * D * 4                     # scale / shift
                    + (2 << 20))                    # headroom

        while budget(tn) > vmem_cap and tn > 8:
            tn = max(8, _round_up(tn // 2, 8))
        vmem_bytes = int(min(max(budget(tn), 16 << 20), vmem_cap))

        grid = (pl.cdiv(N, tn),)
        xn, logits = pl.pallas_call(
            classblock_kernel_resident,
            out_shape=(
                jax.ShapeDtypeStruct((N, D), xn_dtype),
                jax.ShapeDtypeStruct((N, c_pad), jnp.float32),
            ),
            grid_spec=pltpu.PrefetchScalarGridSpec(
                num_scalar_prefetch=0,
                grid=grid,
                in_specs=[
                    pl.BlockSpec((tn, D), lambda i: (i, 0)),        # x
                    pl.BlockSpec((1, D), lambda i: (0, 0)),         # scale
                    pl.BlockSpec((1, D), lambda i: (0, 0)),         # shift
                    pl.BlockSpec((D, c_pad), lambda i: (0, 0)),     # weight (resident)
                ],
                out_specs=[
                    pl.BlockSpec((tn, D), lambda i: (i, 0)),        # x_normed
                    pl.BlockSpec((tn, c_pad), lambda i: (i, 0)),    # logits
                ],
            ),
            compiler_params=pltpu.CompilerParams(
                dimension_semantics=("parallel",),
                vmem_limit_bytes=vmem_bytes),
        )(x, scale, shift, w_t)
    else:
        # Fallback for very large (D, C): tile the class axis, keep it sequential.
        tc = max(128, min(_round_up(int(tc), 128), c_pad))

        def budget(bn, bc):
            return (2 * bn * D * x_isize            # x tiles
                    + 2 * bn * D * xn_isize         # xn output tiles
                    + bn * D * 2                    # xn bf16 scratch
                    + 2 * bn * bc * 4               # logits output tiles
                    + 2 * D * bc * 2                # weight tiles
                    + 4 * D * 4                     # scale / shift
                    + (2 << 20))                    # headroom

        while budget(tn, tc) > vmem_cap and (tn > 8 or tc > 128):
            if tn > 8:
                tn = max(8, _round_up(tn // 2, 8))
            else:
                tc = max(128, _round_up(tc // 2, 128))
        vmem_bytes = int(min(max(budget(tn, tc), 16 << 20), vmem_cap))

        grid = (pl.cdiv(N, tn), pl.cdiv(c_pad, tc))
        xn, logits = pl.pallas_call(
            classblock_kernel_tiled,
            out_shape=(
                jax.ShapeDtypeStruct((N, D), xn_dtype),
                jax.ShapeDtypeStruct((N, c_pad), jnp.float32),
            ),
            grid_spec=pltpu.PrefetchScalarGridSpec(
                num_scalar_prefetch=0,
                grid=grid,
                in_specs=[
                    pl.BlockSpec((tn, D), lambda i, j: (i, 0)),     # x (resident over j)
                    pl.BlockSpec((1, D), lambda i, j: (0, 0)),      # scale
                    pl.BlockSpec((1, D), lambda i, j: (0, 0)),      # shift
                    pl.BlockSpec((D, tc), lambda i, j: (0, j)),     # weight tile
                ],
                out_specs=[
                    pl.BlockSpec((tn, D), lambda i, j: (i, 0)),     # x_normed
                    pl.BlockSpec((tn, tc), lambda i, j: (i, j)),    # logits
                ],
                scratch_shapes=[pltpu.VMEM((tn, D), jnp.bfloat16)],
            ),
            compiler_params=pltpu.CompilerParams(
                # class axis MUST stay sequential: xn is written only at j == 0.
                dimension_semantics=("parallel", "arbitrary"),
                vmem_limit_bytes=vmem_bytes),
        )(x, scale, shift, w_t)

    if c_pad != C:
        logits = logits[:, :C]
    return xn, logits


def reference_forward(x, gamma, beta, running_mean, running_var, weight, eps=EPS):
    xn = (x - running_mean) * jax.lax.rsqrt(running_var + eps) * gamma + beta
    return xn, xn @ weight.T


if __name__ == "__main__":
    input_dim = 128
    class_num = 200   # non-multiple of 128 -> exercises the lane padding path
    batch = 8

    key = jax.random.PRNGKey(0)
    kx, kg, kw = jax.random.split(key, 3)

    # Deterministic parameter init matching the module's __init__ semantics:
    #   BN (weights_init_kaiming): weight ~ N(1, 0.02), bias = 0 (frozen)
    #   running stats at PyTorch defaults: mean=0, var=1
    #   classifier (weights_init_classifier): weight ~ N(0, 0.001), no bias
    gamma = (1.0 + 0.02 * jax.random.normal(kg, (input_dim,))).astype(jnp.float32)
    beta = jnp.zeros((input_dim,), jnp.float32)
    running_mean = jnp.zeros((input_dim,), jnp.float32)
    running_var = jnp.ones((input_dim,), jnp.float32)
    # PyTorch Linear weight layout: (class_num, input_dim).
    weight = (0.001 * jax.random.normal(kw, (class_num, input_dim))).astype(jnp.float32)

    x = jax.random.normal(kx, (batch, input_dim), jnp.float32)

    xn, logits = classblock_forward(x, gamma, beta, running_mean, running_var, weight)
    jax.block_until_ready((xn, logits))

    xn_ref, logits_ref = reference_forward(x, gamma, beta, running_mean,
                                           running_var, weight)
    assert xn.shape == (batch, input_dim)
    assert logits.shape == (batch, class_num)
    # x_normed is pure f32 VPU work -> tight tolerance.
    assert jnp.allclose(xn, xn_ref, atol=1e-5, rtol=1e-5)
    # logits use the bf16 MXU path (f32 accumulation) -> loosened tolerance.
    assert jnp.allclose(logits, logits_ref, atol=5e-4, rtol=5e-2)

    print("KERNEL_OK")
</pallas_src>

<mosaic_0001>
module attributes {stable_mosaic.version = 11 : i64} {
  func.func @classblock_kernel_resident(%arg0: i32, %arg1: memref<8x128xf32, #tpu.memory_space<vmem>>, %arg2: memref<1x128xf32, #tpu.memory_space<vmem>>, %arg3: memref<1x128xf32, #tpu.memory_space<vmem>>, %arg4: memref<128x256xbf16, #tpu.memory_space<vmem>>, %arg5: memref<8x128xf32, #tpu.memory_space<vmem>>, %arg6: memref<8x256xf32, #tpu.memory_space<vmem>>) attributes {dimension_semantics = [#tpu.dimension_semantics<parallel>], iteration_bounds = array<i64: 1>, scalar_prefetch = 0 : i64, scratch_operands = 0 : i64, tpu.core_type = #tpu.core_type<tc>, window_params = [{transform_indices = @transform_0, window_bounds = array<i64: 8, 128>}, {pipeline_mode = #tpu.pipeline_mode<synchronous>, transform_indices = @transform_1, window_bounds = array<i64: 1, 128>}, {pipeline_mode = #tpu.pipeline_mode<synchronous>, transform_indices = @transform_2, window_bounds = array<i64: 1, 128>}, {pipeline_mode = #tpu.pipeline_mode<synchronous>, transform_indices = @transform_3, window_bounds = array<i64: 128, 256>}, {transform_indices = @transform_4, window_bounds = array<i64: 8, 128>}, {transform_indices = @transform_5, window_bounds = array<i64: 8, 256>}]} {
    %c0 = arith.constant 0 : index
    %c0_0 = arith.constant 0 : index
    %0 = vector.load %arg1[%c0, %c0_0] : memref<8x128xf32, #tpu.memory_space<vmem>>, vector<8x128xf32>
    %c0_1 = arith.constant 0 : index
    %c0_2 = arith.constant 0 : index
    %1 = vector.load %arg2[%c0_1, %c0_2] : memref<1x128xf32, #tpu.memory_space<vmem>>, vector<1x128xf32>
    %2 = vector.broadcast %1 : vector<1x128xf32> to vector<8x128xf32>
    %3 = arith.mulf %0, %2 : vector<8x128xf32>
    %c0_3 = arith.constant 0 : index
    %c0_4 = arith.constant 0 : index
    %4 = vector.load %arg3[%c0_3, %c0_4] : memref<1x128xf32, #tpu.memory_space<vmem>>, vector<1x128xf32>
    %5 = vector.broadcast %4 : vector<1x128xf32> to vector<8x128xf32>
    %6 = arith.addf %3, %5 : vector<8x128xf32>
    %c0_5 = arith.constant 0 : index
    %c0_6 = arith.constant 0 : index
    %7 = vector.load %arg5[%c0_5, %c0_6] : memref<8x128xf32, #tpu.memory_space<vmem>>, vector<8x128xf32>
    tpu.vector_store %arg5[%c0_5, %c0_6], %6 {strides = array<i32>} : memref<8x128xf32, #tpu.memory_space<vmem>>, vector<8x128xf32>,
    %8 = arith.truncf %6 : vector<8x128xf32> to vector<8x128xbf16>
    %c0_7 = arith.constant 0 : index
    %c0_8 = arith.constant 0 : index
    %9 = vector.load %arg4[%c0_7, %c0_8] : memref<128x256xbf16, #tpu.memory_space<vmem>>, vector<128x256xbf16>
    %cst = arith.constant dense<0.000000e+00> : vector<8x256xf32>
    %10 = tpu.matmul %8, %9, %cst {dimension_numbers = #tpu.dot_dimension_numbers<[1], [0], [0], [1], [0, 0, 1, 1], [], []>} : vector<8x128xbf16>, vector<128x256xbf16>, vector<8x256xf32> -> vector<8x256xf32>
    %c0_9 = arith.constant 0 : index
    %c0_10 = arith.constant 0 : index
    %11 = vector.load %arg6[%c0_9, %c0_10] : memref<8x256xf32, #tpu.memory_space<vmem>>, vector<8x256xf32>
    tpu.vector_store %arg6[%c0_9, %c0_10], %10 {strides = array<i32>} : memref<8x256xf32, #tpu.memory_space<vmem>>, vector<8x256xf32>,
    return
  }
  func.func @transform_0(%arg0: i32) -> (i32, i32) {
    %c0_i32 = arith.constant 0 : i32
    %c0_i32_0 = arith.constant 0 : i32
    return %arg0, %c0_i32 : i32, i32
  }
  func.func @transform_1(%arg0: i32) -> (i32, i32) {
    %c0_i32 = arith.constant 0 : i32
    %c0_i32_0 = arith.constant 0 : i32
    %c0_i32_1 = arith.constant 0 : i32
    return %c0_i32, %c0_i32_0 : i32, i32
  }
  func.func @transform_2(%arg0: i32) -> (i32, i32) {
    %c0_i32 = arith.constant 0 : i32
    %c0_i32_0 = arith.constant 0 : i32
    %c0_i32_1 = arith.constant 0 : i32
    return %c0_i32, %c0_i32_0 : i32, i32
  }
  func.func @transform_3(%arg0: i32) -> (i32, i32) {
    %c0_i32 = arith.constant 0 : i32
    %c0_i32_0 = arith.constant 0 : i32
    %c0_i32_1 = arith.constant 0 : i32
    return %c0_i32, %c0_i32_0 : i32, i32
  }
  func.func @transform_4(%arg0: i32) -> (i32, i32) {
    %c0_i32 = arith.constant 0 : i32
    %c0_i32_0 = arith.constant 0 : i32
    return %arg0, %c0_i32 : i32, i32
  }
  func.func @transform_5(%arg0: i32) -> (i32, i32) {
    %c0_i32 = arith.constant 0 : i32
    %c0_i32_0 = arith.constant 0 : i32
    return %arg0, %c0_i32 : i32, i32
  }
}

</mosaic_0001>

<llo_original>
// kernel: tpu_custom_call.1
$region0: #{tpu_custom_call.1}
  #allocation0 [shape = 'u32[]', space=smem, size = 0x4, offset = 0x4, fixed_abs, tag = 'smem constant byte address 0x4 - core index']
  #allocation1 [shape = 'u32[144,128]{1,0:T(1,128)}', space=vmem, size = 0x12000, scoped, tag = 'internal scratch']
  %s0 = inlined_call_operand.hbm [shape: f32[8,128], index: 0, kind: input, shape index: {}]
  %s1 = inlined_call_operand.vmem [shape: f32[1,128], index: 1, kind: input, shape index: {}]
  %s2 = inlined_call_operand.vmem [shape: f32[1,128], index: 2, kind: input, shape index: {}]
  %s3 = inlined_call_operand.hbm [shape: bf16[128,256], index: 3, kind: input, shape index: {}]
  %s4 = inlined_call_operand.hbm [shape: f32[8,128], index: 4, kind: output, shape index: {0}]
  %s5 = inlined_call_operand.hbm [shape: f32[8,256], index: 5, kind: output, shape index: {1}]
  %6 = xla_tuple %s4, %s5
  %s7 = sld [smem:[#allocation0]]
  $region42: #{tpu_custom_call.1} parent=0
    _
  %s9 = ssub.s32 1, %s7
  %s10 = scalar_select 0, %s9, %s7
  $region1: #{tpu_custom_call.1} parent=0
    #allocation2 [shape = 'u8[4096]{0}', space=vmem, size = 0x1000, scoped, tag = 'input window, operand 0, single buffered']
    #allocation3 [shape = 's32[1]{0}', space=sflag, size = 0x4, scoped, tag = 'scoped memory for tpu_custom_call.1']
    #allocation4 [shape = 's32[1]{0}', space=sflag, size = 0x4, scoped, tag = 'scoped memory for tpu_custom_call.1']
    #allocation5 [shape = 'u8[65536]{0}', space=vmem, size = 0x10000, scoped, tag = 'input window, operand 3, single buffered']
    #allocation6 [shape = 's32[1]{0}', space=sflag, size = 0x4, scoped, tag = 'scoped memory for tpu_custom_call.1']
    #allocation7 [shape = 'u8[4096]{0}', space=vmem, size = 0x1000, scoped, tag = 'output window, operand 0, single buffered']
    #allocation8 [shape = 'u8[8192]{0}', space=vmem, size = 0x2000, scoped, tag = 'output window, operand 1, single buffered']
    #allocation9 [shape = 's32[1]{0}', space=sflag, size = 0x4, scoped, tag = 'scoped memory for tpu_custom_call.1']
    %11 = vsyncpa [#allocation3], 0
    %12 = vsyncpa [#allocation6], 0
    %13 = vsyncpa [#allocation4], 0
    %14 = vsyncpa [#allocation9], 0
    // Predicated region
    $region2: #{tpu_custom_call.1} parent=1 // pred_check
      _
    $region3: #{tpu_custom_call.1} parent=1 // pred_check_branch
      %16 = sbr.rel (0) target = $region5
    $region4: #{tpu_custom_call.1} parent=1 // pred_region
      %s18 = ssub.s32 128, 128
      %19 = vsyncadd [#allocation3], %s18
      %s21 = sshll.u32 [#allocation2], 4
      %s22 = int_to_ptr.vmem [resolvable:$true] %s21
      %24 = dma.hbm_to_vmem [thread:$0]  %s0, 128, %s22, [#allocation3]
    $region5: #{tpu_custom_call.1} parent=1 // pred_fallthru
      _
    // Predicated region
    $region6: #{tpu_custom_call.1} parent=1 // pred_check
      _
    $region7: #{tpu_custom_call.1} parent=1 // pred_check_branch
      %26 = sbr.rel (0) target = $region9
    $region8: #{tpu_custom_call.1} parent=1 // pred_region
      _
    $region9: #{tpu_custom_call.1} parent=1 // pred_fallthru
      _
    // Predicated region
    $region10: #{tpu_custom_call.1} parent=1 // pred_check
      _
    $region11: #{tpu_custom_call.1} parent=1 // pred_check_branch
      %28 = sbr.rel (0) target = $region13
    $region12: #{tpu_custom_call.1} parent=1 // pred_region
      _
    $region13: #{tpu_custom_call.1} parent=1 // pred_fallthru
      _
    // Predicated region
    $region14: #{tpu_custom_call.1} parent=1 // pred_check
      _
    $region15: #{tpu_custom_call.1} parent=1 // pred_check_branch
      %30 = sbr.rel (0) target = $region17
    $region16: #{tpu_custom_call.1} parent=1 // pred_region
      %s32 = ssub.s32 2048, 2048
      %33 = vsyncadd [#allocation6], %s32
      %s34 = sshll.u32 [#allocation5], 4
      %s35 = int_to_ptr.vmem [resolvable:$true] %s34
      %40 = dma.hbm_to_vmem [thread:$0]  %s3, 2048, %s35, [#allocation6], 128, 128, 8
    $region17: #{tpu_custom_call.1} parent=1 // pred_fallthru
      _
    // Predicated region
    $region18: #{tpu_custom_call.1} parent=1 // pred_check
      _
    $region19: #{tpu_custom_call.1} parent=1 // pred_check_branch
      %42 = sbr.rel (0) target = $region21
    $region20: #{tpu_custom_call.1} parent=1 // pred_region
      %43 = dma.done [#allocation3], 128
    $region21: #{tpu_custom_call.1} parent=1 // pred_fallthru
      _
    // Predicated region
    $region22: #{tpu_custom_call.1} parent=1 // pred_check
      _
    $region23: #{tpu_custom_call.1} parent=1 // pred_check_branch
      %45 = sbr.rel (0) target = $region25
    $region24: #{tpu_custom_call.1} parent=1 // pred_region
      %46 = dma.done [#allocation6], 2048
    $region25: #{tpu_custom_call.1} parent=1 // pred_fallthru
      _
    %v48 = vld [vmem:[#allocation2] sm:$0xff]
    %v49 = vld [vmem:[%s1] sm:$0x1]
    %v51 = vlaneseq
    %v52 = vshrl.u32 %v51, 7
    %v53 = vsub.s32 0, %v52
    %v54 = vrot.slane %v49, %v53
    %v56 = vmul.f32 %v48, %v54
    %v57 = vld [vmem:[%s2] sm:$0x1]
    %v59 = vlaneseq
    %v60 = vshrl.u32 %v59, 7
    %v61 = vsub.s32 0, %v60
    %v62 = vrot.slane %v57, %v61
    %v64 = vadd.f32 %v56, %v62
    %65 = vst [vmem:[#allocation7] sm:$0xff] %v64
    %v66 = vpack.c.bf16 %v64, %v64
    %v67 = vld [vmem:[#allocation5] sm:$0xff]
    %v68 = vld [vmem:[#allocation5 + $0x8] sm:$0xff]
    %v69 = vld [vmem:[#allocation5 + $0x10] sm:$0xff]
    %v70 = vld [vmem:[#allocation5 + $0x18] sm:$0xff]
    %v71 = vld [vmem:[#allocation5 + $0x20] sm:$0xff]
    %v72 = vld [vmem:[#allocation5 + $0x28] sm:$0xff]
    %v73 = vld [vmem:[#allocation5 + $0x30] sm:$0xff]
    %v74 = vld [vmem:[#allocation5 + $0x38] sm:$0xff]
    %v75 = vld [vmem:[#allocation5 + $0x40] sm:$0xff]
    %v76 = vld [vmem:[#allocation5 + $0x48] sm:$0xff]
    %v77 = vld [vmem:[#allocation5 + $0x50] sm:$0xff]
    %v78 = vld [vmem:[#allocation5 + $0x58] sm:$0xff]
    %v79 = vld [vmem:[#allocation5 + $0x60] sm:$0xff]
    %v80 = vld [vmem:[#allocation5 + $0x68] sm:$0xff]
    %v81 = vld [vmem:[#allocation5 + $0x70] sm:$0xff]
    %v82 = vld [vmem:[#allocation5 + $0x78] sm:$0xff]
    %v99 = vunpack.c.l.b16 %v67
    %v100 = vunpack.c.h.b16 %v67
    %v101 = vunpack.c.l.b16 %v68
    %v102 = vunpack.c.h.b16 %v68
    %v103 = vunpack.c.l.b16 %v69
    %v104 = vunpack.c.h.b16 %v69
    %v105 = vunpack.c.l.b16 %v70
    %v106 = vunpack.c.h.b16 %v70
    %v107 = vunpack.c.l.b16 %v71
    %v108 = vunpack.c.h.b16 %v71
    %v109 = vunpack.c.l.b16 %v72
    %v110 = vunpack.c.h.b16 %v72
    %v111 = vunpack.c.l.b16 %v73
    %v112 = vunpack.c.h.b16 %v73
    %v113 = vunpack.c.l.b16 %v74
    %v114 = vunpack.c.h.b16 %v74
    %v115 = vunpack.c.l.b16 %v75
    %v116 = vunpack.c.h.b16 %v75
    %v117 = vunpack.c.l.b16 %v76
    %v118 = vunpack.c.h.b16 %v76
    %v119 = vunpack.c.l.b16 %v77
    %v120 = vunpack.c.h.b16 %v77
    %v121 = vunpack.c.l.b16 %v78
    %v122 = vunpack.c.h.b16 %v78
    %v123 = vunpack.c.l.b16 %v79
    %v124 = vunpack.c.h.b16 %v79
    %v125 = vunpack.c.l.b16 %v80
    %v126 = vunpack.c.h.b16 %v80
    %v127 = vunpack.c.l.b16 %v81
    %v128 = vunpack.c.h.b16 %v81
    %v129 = vunpack.c.l.b16 %v82
    %v130 = vunpack.c.h.b16 %v82
    %v131 = vpack.c.b16 %v101, %v99
    %v132 = vpack.c.b16 %v102, %v100
    %v133 = vpack.c.b16 %v105, %v103
    %v134 = vpack.c.b16 %v106, %v104
    %v135 = vpack.c.b16 %v109, %v107
    %v136 = vpack.c.b16 %v110, %v108
    %v137 = vpack.c.b16 %v113, %v111
    %v138 = vpack.c.b16 %v114, %v112
    %v139 = vpack.c.b16 %v117, %v115
    %v140 = vpack.c.b16 %v118, %v116
    %v141 = vpack.c.b16 %v121, %v119
    %v142 = vpack.c.b16 %v122, %v120
    %v143 = vpack.c.b16 %v125, %v123
    %v144 = vpack.c.b16 %v126, %v124
    %v145 = vpack.c.b16 %v129, %v127
    %v146 = vpack.c.b16 %v130, %v128
    %163 = vmatprep.subr.bf16.mxu0 %v132
    %164 = vmatpush1.bf16.msra.mxu0 %v131
    %165 = vmatprep.subr.bf16.mxu0 %v134
    %166 = vmatpush1.bf16.msra.mxu0 %v133
    %167 = vmatprep.subr.bf16.mxu0 %v136
    %168 = vmatpush1.bf16.msra.mxu0 %v135
    %169 = vmatprep.subr.bf16.mxu0 %v138
    %170 = vmatpush1.bf16.msra.mxu0 %v137
    %171 = vmatprep.subr.bf16.mxu0 %v140
    %172 = vmatpush1.bf16.msra.mxu0 %v139
    %173 = vmatprep.subr.bf16.mxu0 %v142
    %174 = vmatpush1.bf16.msra.mxu0 %v141
    %175 = vmatprep.subr.bf16.mxu0 %v144
    %176 = vmatpush1.bf16.msra.mxu0 %v143
    %177 = vmatprep.subr.bf16.mxu0 %v146
    %178 = vmatpush1.bf16.msra.mxu0 %v145
    %179 = vmatprep.subr.bf16.mxu0 0
    %180 = vmatpush1.bf16.msra.mxu0 0
    %181 = vmatprep.subr.bf16.mxu0 0
    %182 = vmatpush1.bf16.msra.mxu0 0
    %183 = vmatprep.subr.bf16.mxu0 0
    %184 = vmatpush1.bf16.msra.mxu0 0
    %185 = vmatprep.subr.bf16.mxu0 0
    %186 = vmatpush1.bf16.msra.mxu0 0
    %187 = vmatprep.subr.bf16.mxu0 0
    %188 = vmatpush1.bf16.msra.mxu0 0
    %189 = vmatprep.subr.bf16.mxu0 0
    %190 = vmatpush1.bf16.msra.mxu0 0
    %191 = vmatprep.subr.bf16.mxu0 0
    %192 = vmatpush1.bf16.msra.mxu0 0
    %193 = vmatprep.subr.bf16.mxu0 0
    %194 = vmatpush1.bf16.msra.mxu0 0
    %195 = vmatprep.mubr.bf16.mxu0 0
    %196 = vmatmul.mubr.bf16.gmra.mrb[0].mxu0 %v66
    %v197 = vpop.f32.mrb[0].mxu0
    %v198 = vadd.f32 0.0, %v197
    %v199 = vpop.f32.mrb[0].mxu0
    %v200 = vadd.f32 0.0, %v199
    %v201 = vpop.f32.mrb[0].mxu0
    %v202 = vpop.f32.mrb[0].mxu0
    %203 = vdwg.mxu0
    %204 = vst [vmem:[#allocation8] sm:$0xff] %v198
    %205 = vst [vmem:[#allocation8 + $0x8] sm:$0xff] %v200
    // Predicated region
    $region26: #{tpu_custom_call.1} parent=1 // pred_check
      _
    $region27: #{tpu_custom_call.1} parent=1 // pred_check_branch
      %207 = sbr.rel (0) target = $region29
    $region28: #{tpu_custom_call.1} parent=1 // pred_region
      %s209 = ssub.s32 128, 128
      %210 = vsyncadd [#allocation4], %s209
      %s212 = sshll.u32 [#allocation7], 4
      %s213 = int_to_ptr.vmem [resolvable:$true] %s212
      %215 = dma.vmem_to_hbm [thread:$0]  %s213, 128, %s4, [#allocation4]
    $region29: #{tpu_custom_call.1} parent=1 // pred_fallthru
      _
    // Predicated region
    $region30: #{tpu_custom_call.1} parent=1 // pred_check
      _
    $region31: #{tpu_custom_call.1} parent=1 // pred_check_branch
      %217 = sbr.rel (0) target = $region33
    $region32: #{tpu_custom_call.1} parent=1 // pred_region
      %s219 = ssub.s32 256, 256
      %220 = vsyncadd [#allocation9], %s219
      %s222 = sshll.u32 [#allocation8], 4
      %s223 = int_to_ptr.vmem [resolvable:$true] %s222
      %225 = dma.vmem_to_hbm [thread:$0]  %s223, 256, %s5, [#allocation9]
    $region33: #{tpu_custom_call.1} parent=1 // pred_fallthru
      _
    // Predicated region
    $region34: #{tpu_custom_call.1} parent=1 // pred_check
      _
    $region35: #{tpu_custom_call.1} parent=1 // pred_check_branch
      %227 = sbr.rel (0) target = $region37
    $region36: #{tpu_custom_call.1} parent=1 // pred_region
      %228 = dma.done [#allocation4], 128
    $region37: #{tpu_custom_call.1} parent=1 // pred_fallthru
      _
    // Predicated region
    $region38: #{tpu_custom_call.1} parent=1 // pred_check
      _
    $region39: #{tpu_custom_call.1} parent=1 // pred_check_branch
      %230 = sbr.rel (0) target = $region41
    $region40: #{tpu_custom_call.1} parent=1 // pred_region
      %231 = dma.done [#allocation9], 256
    $region41: #{tpu_custom_call.1} parent=1 // pred_fallthru
      _
    %232 = vsyncpa [#allocation3], 1
    %233 = vsyncpa [#allocation6], 1
    %234 = vsyncpa [#allocation4], 1
    %235 = vsyncpa [#allocation9], 1

</llo_original>
